<compile_context>
chip_gen: v7x
topology: tpu7x:2x2x1
jax: 0.10.0
libtpu: 0.0.40
codegen_flags: <defaults>
</compile_context>

<pallas_src>
import functools

import jax
import jax.numpy as jnp
from jax.experimental import pallas as pl
from jax.experimental.pallas import tpu as pltpu

HIDDEN = 256


def _round_up(x, m):
    return (x + m - 1) // m * m


def _grasp_valid_kernel(x_ref, w1_ref, b1_ref, w2_ref, b2_ref, w3_ref, b3_ref,
                        o_ref):
    x = x_ref[...]                                                   # (TB, D)

    # Layer 1: Linear(state_dim, 256) + ReLU  (MXU, f32 accumulate)
    h = jnp.dot(x, w1_ref[...], preferred_element_type=jnp.float32)
    h = jnp.maximum(h + b1_ref[...], 0.0)

    # Layer 2: Linear(256, 256) + ReLU
    h = jnp.dot(h, w2_ref[...], preferred_element_type=jnp.float32)
    h = jnp.maximum(h + b2_ref[...], 0.0)

    # Layer 3: Linear(256, 1) + Sigmoid (bias is an SMEM scalar)
    h = jnp.dot(h, w3_ref[...], preferred_element_type=jnp.float32)
    h = h + b3_ref[0, 0]
    e = jnp.exp(-h)                                                  # EUP
    o_ref[...] = (1.0 / (1.0 + e)).astype(o_ref.dtype)


@jax.jit
def grasp_valid_forward(state, params):
    """state: (B, state_dim) f32. params: kernel-layout dict (see prepare_params)."""
    B, D = state.shape
    H = params["w1"].shape[1]

    # Batch tiling: small batches become one 8-row-aligned tile; large batches
    # are split into 512-row tiles (weights stay VMEM-resident across tiles).
    TB = 512 if B >= 512 else _round_up(B, 8)
    B_pad = _round_up(B, TB)
    x = state if B_pad == B else jnp.pad(state, ((0, B_pad - B), (0, 0)))

    out = pl.pallas_call(
        _grasp_valid_kernel,
        out_shape=jax.ShapeDtypeStruct((B_pad, 1), jnp.float32),
        grid=(B_pad // TB,),
        in_specs=[
            pl.BlockSpec((TB, D), lambda i: (i, 0)),      # x: tiled over batch
            pl.BlockSpec((D, H), lambda i: (0, 0)),       # w1: resident
            pl.BlockSpec((1, H), lambda i: (0, 0)),       # b1: resident
            pl.BlockSpec((H, H), lambda i: (0, 0)),       # w2: resident
            pl.BlockSpec((1, H), lambda i: (0, 0)),       # b2: resident
            pl.BlockSpec((H, 1), lambda i: (0, 0)),       # w3: resident
            pl.BlockSpec(memory_space=pltpu.MemorySpace.SMEM),  # b3: scalar
        ],
        out_specs=pl.BlockSpec((TB, 1), lambda i: (i, 0)),
        compiler_params=pltpu.CompilerParams(
            dimension_semantics=("parallel",),
            vmem_limit_bytes=8 << 20,
        ),
    )(x, params["w1"], params["b1"], params["w2"], params["b2"],
      params["w3"], params["b3"])

    return out if B_pad == B else out[:B]


def init_params(key, state_dim, hidden=HIDDEN):
    """PyTorch-convention params (w: (out, in)), nn.Linear default init."""
    ks = jax.random.split(key, 6)

    def lin(kw, kb, fan_in, fan_out):
        bound = 1.0 / jnp.sqrt(jnp.float32(fan_in))
        w = jax.random.uniform(kw, (fan_out, fan_in), jnp.float32, -bound, bound)
        b = jax.random.uniform(kb, (fan_out,), jnp.float32, -bound, bound)
        return w, b

    w1, b1 = lin(ks[0], ks[1], state_dim, hidden)
    w2, b2 = lin(ks[2], ks[3], hidden, hidden)
    w3, b3 = lin(ks[4], ks[5], hidden, 1)
    return {"w1": w1, "b1": b1, "w2": w2, "b2": b2, "w3": w3, "b3": b3}


def prepare_params(torch_params):
    """One-time layout prep: (out,in) -> (in,out) weights, 2-D biases.
    Done once at init, NOT per forward call."""
    return {
        "w1": jnp.asarray(torch_params["w1"]).T,
        "b1": jnp.asarray(torch_params["b1"]).reshape(1, -1),
        "w2": jnp.asarray(torch_params["w2"]).T,
        "b2": jnp.asarray(torch_params["b2"]).reshape(1, -1),
        "w3": jnp.asarray(torch_params["w3"]).T,
        "b3": jnp.asarray(torch_params["b3"]).reshape(1, 1),
    }


def reference_forward(state, torch_params):
    a = jnp.maximum(state @ torch_params["w1"].T + torch_params["b1"], 0.0)
    a = jnp.maximum(a @ torch_params["w2"].T + torch_params["b2"], 0.0)
    a = jax.nn.sigmoid(a @ torch_params["w3"].T + torch_params["b3"])
    return a


if __name__ == "__main__":
    key = jax.random.PRNGKey(0)
    k_state, k_params = jax.random.split(key)

    batch, state_dim = 8, 72  # small kinova-gripper-like state vector
    state = jax.random.normal(k_state, (batch, state_dim), jnp.float32)

    torch_params = init_params(k_params, state_dim)
    params = prepare_params(torch_params)          # one-time, out of hot path
    params = jax.device_put(params)

    out = grasp_valid_forward(state, params)
    out = jax.block_until_ready(out)

    ref = reference_forward(state, torch_params)
    assert out.shape == (batch, 1), out.shape
    assert jnp.allclose(out, ref, atol=1e-5, rtol=1e-5), (out, ref)

    print("KERNEL_OK")
</pallas_src>

<mosaic_0001>
module attributes {stable_mosaic.version = 11 : i64} {
  func.func @_grasp_valid_kernel(%arg0: i32, %arg1: memref<8x72xf32, #tpu.memory_space<vmem>>, %arg2: memref<72x256xf32, #tpu.memory_space<vmem>>, %arg3: memref<1x256xf32, #tpu.memory_space<vmem>>, %arg4: memref<256x256xf32, #tpu.memory_space<vmem>>, %arg5: memref<1x256xf32, #tpu.memory_space<vmem>>, %arg6: memref<256x1xf32, #tpu.memory_space<vmem>>, %arg7: memref<1x1xf32, #tpu.memory_space<smem>>, %arg8: memref<8x1xf32, #tpu.memory_space<vmem>>) attributes {dimension_semantics = [#tpu.dimension_semantics<parallel>], iteration_bounds = array<i64: 1>, scalar_prefetch = 0 : i64, scratch_operands = 0 : i64, tpu.core_type = #tpu.core_type<tc>, window_params = [{transform_indices = @transform_0, window_bounds = array<i64: 8, 72>}, {pipeline_mode = #tpu.pipeline_mode<synchronous>, transform_indices = @transform_1, window_bounds = array<i64: 72, 256>}, {pipeline_mode = #tpu.pipeline_mode<synchronous>, transform_indices = @transform_2, window_bounds = array<i64: 1, 256>}, {pipeline_mode = #tpu.pipeline_mode<synchronous>, transform_indices = @transform_3, window_bounds = array<i64: 256, 256>}, {pipeline_mode = #tpu.pipeline_mode<synchronous>, transform_indices = @transform_4, window_bounds = array<i64: 1, 256>}, {pipeline_mode = #tpu.pipeline_mode<synchronous>, transform_indices = @transform_5, window_bounds = array<i64: 256, 1>}, {transform_indices = @transform_6, window_bounds = array<i64: 1, 1>}, {transform_indices = @transform_7, window_bounds = array<i64: 8, 1>}]} {
    %c0 = arith.constant 0 : index
    %c0_0 = arith.constant 0 : index
    %0 = vector.load %arg1[%c0, %c0_0] : memref<8x72xf32, #tpu.memory_space<vmem>>, vector<8x72xf32>
    %c0_1 = arith.constant 0 : index
    %c0_2 = arith.constant 0 : index
    %1 = vector.load %arg2[%c0_1, %c0_2] : memref<72x256xf32, #tpu.memory_space<vmem>>, vector<72x256xf32>
    %cst = arith.constant dense<0.000000e+00> : vector<8x256xf32>
    %2 = tpu.matmul %0, %1, %cst {dimension_numbers = #tpu.dot_dimension_numbers<[1], [0], [0], [1], [0, 0, 1, 1], [], []>} : vector<8x72xf32>, vector<72x256xf32>, vector<8x256xf32> -> vector<8x256xf32>
    %c0_3 = arith.constant 0 : index
    %c0_4 = arith.constant 0 : index
    %3 = vector.load %arg3[%c0_3, %c0_4] : memref<1x256xf32, #tpu.memory_space<vmem>>, vector<1x256xf32>
    %4 = vector.broadcast %3 : vector<1x256xf32> to vector<8x256xf32>
    %5 = arith.addf %2, %4 : vector<8x256xf32>
    %cst_5 = arith.constant 0.000000e+00 : f32
    %6 = vector.broadcast %cst_5 : f32 to vector<8x256xf32>
    %7 = arith.maximumf %5, %6 : vector<8x256xf32>
    %c0_6 = arith.constant 0 : index
    %c0_7 = arith.constant 0 : index
    %8 = vector.load %arg4[%c0_6, %c0_7] : memref<256x256xf32, #tpu.memory_space<vmem>>, vector<256x256xf32>
    %cst_8 = arith.constant dense<0.000000e+00> : vector<8x256xf32>
    %9 = tpu.matmul %7, %8, %cst_8 {dimension_numbers = #tpu.dot_dimension_numbers<[1], [0], [0], [1], [0, 0, 1, 1], [], []>} : vector<8x256xf32>, vector<256x256xf32>, vector<8x256xf32> -> vector<8x256xf32>
    %c0_9 = arith.constant 0 : index
    %c0_10 = arith.constant 0 : index
    %10 = vector.load %arg5[%c0_9, %c0_10] : memref<1x256xf32, #tpu.memory_space<vmem>>, vector<1x256xf32>
    %11 = vector.broadcast %10 : vector<1x256xf32> to vector<8x256xf32>
    %12 = arith.addf %9, %11 : vector<8x256xf32>
    %cst_11 = arith.constant 0.000000e+00 : f32
    %13 = vector.broadcast %cst_11 : f32 to vector<8x256xf32>
    %14 = arith.maximumf %12, %13 : vector<8x256xf32>
    %c0_12 = arith.constant 0 : index
    %c0_13 = arith.constant 0 : index
    %15 = vector.load %arg6[%c0_12, %c0_13] : memref<256x1xf32, #tpu.memory_space<vmem>>, vector<256x1xf32>
    %cst_14 = arith.constant dense<0.000000e+00> : vector<8x1xf32>
    %16 = tpu.matmul %14, %15, %cst_14 {dimension_numbers = #tpu.dot_dimension_numbers<[1], [0], [0], [1], [0, 0, 1, 1], [], []>} : vector<8x256xf32>, vector<256x1xf32>, vector<8x1xf32> -> vector<8x1xf32>
    %c0_15 = arith.constant 0 : index
    %c0_16 = arith.constant 0 : index
    %17 = memref.load %arg7[%c0_15, %c0_16] : memref<1x1xf32, #tpu.memory_space<smem>>
    %18 = vector.broadcast %17 : f32 to vector<8x1xf32>
    %19 = arith.addf %16, %18 : vector<8x1xf32>
    %cst_17 = arith.constant 0.000000e+00 : f32
    %20 = vector.broadcast %cst_17 : f32 to vector<8x1xf32>
    %21 = arith.subf %20, %19 : vector<8x1xf32>
    %22 = math.exp %21 : vector<8x1xf32>
    %cst_18 = arith.constant 1.000000e+00 : f32
    %23 = vector.broadcast %cst_18 : f32 to vector<8x1xf32>
    %24 = arith.addf %23, %22 : vector<8x1xf32>
    %cst_19 = arith.constant 1.000000e+00 : f32
    %25 = vector.broadcast %cst_19 : f32 to vector<8x1xf32>
    %26 = arith.divf %25, %24 : vector<8x1xf32>
    %c0_20 = arith.constant 0 : index
    %c0_21 = arith.constant 0 : index
    %27 = vector.load %arg8[%c0_20, %c0_21] : memref<8x1xf32, #tpu.memory_space<vmem>>, vector<8x1xf32>
    tpu.vector_store %arg8[%c0_20, %c0_21], %26 {strides = array<i32>} : memref<8x1xf32, #tpu.memory_space<vmem>>, vector<8x1xf32>,
    return
  }
  func.func @transform_0(%arg0: i32) -> (i32, i32) {
    %c0_i32 = arith.constant 0 : i32
    %c0_i32_0 = arith.constant 0 : i32
    return %arg0, %c0_i32 : i32, i32
  }
  func.func @transform_1(%arg0: i32) -> (i32, i32) {
    %c0_i32 = arith.constant 0 : i32
    %c0_i32_0 = arith.constant 0 : i32
    %c0_i32_1 = arith.constant 0 : i32
    return %c0_i32, %c0_i32_0 : i32, i32
  }
  func.func @transform_2(%arg0: i32) -> (i32, i32) {
    %c0_i32 = arith.constant 0 : i32
    %c0_i32_0 = arith.constant 0 : i32
    %c0_i32_1 = arith.constant 0 : i32
    return %c0_i32, %c0_i32_0 : i32, i32
  }
  func.func @transform_3(%arg0: i32) -> (i32, i32) {
    %c0_i32 = arith.constant 0 : i32
    %c0_i32_0 = arith.constant 0 : i32
    %c0_i32_1 = arith.constant 0 : i32
    return %c0_i32, %c0_i32_0 : i32, i32
  }
  func.func @transform_4(%arg0: i32) -> (i32, i32) {
    %c0_i32 = arith.constant 0 : i32
    %c0_i32_0 = arith.constant 0 : i32
    %c0_i32_1 = arith.constant 0 : i32
    return %c0_i32, %c0_i32_0 : i32, i32
  }
  func.func @transform_5(%arg0: i32) -> (i32, i32) {
    %c0_i32 = arith.constant 0 : i32
    %c0_i32_0 = arith.constant 0 : i32
    %c0_i32_1 = arith.constant 0 : i32
    return %c0_i32, %c0_i32_0 : i32, i32
  }
  func.func @transform_6(%arg0: i32) -> (i32, i32) {
    %c0_i32 = arith.constant 0 : i32
    %c0_i32_0 = arith.constant 0 : i32
    %c0_i32_1 = arith.constant 0 : i32
    return %c0_i32, %c0_i32_0 : i32, i32
  }
  func.func @transform_7(%arg0: i32) -> (i32, i32) {
    %c0_i32 = arith.constant 0 : i32
    %c0_i32_0 = arith.constant 0 : i32
    return %arg0, %c0_i32 : i32, i32
  }
}

</mosaic_0001>

<llo_original>
// kernel: grasp_valid_forward.1
$region0: #{grasp_valid_forward.1}
  #allocation0 [shape = 'u32[]', space=smem, size = 0x4, offset = 0x4, fixed_abs, tag = 'smem constant byte address 0x4 - core index']
  #allocation1 [shape = 'u32[144,128]{1,0:T(1,128)}', space=vmem, size = 0x12000, scoped, tag = 'internal scratch']
  #allocation2 [shape = 'f32[1,1]{1,0:T(1,128)S(6)}', space=smem, size = 0x200, scoped, tag = 'scoped memory for grasp_valid_forward.1']
  %s0 = inlined_call_operand.vmem [shape: f32[8,72], index: 0, kind: input, shape index: {}]
  %s1 = inlined_call_operand.vmem [shape: f32[72,256], index: 1, kind: input, shape index: {}]
  %s2 = inlined_call_operand.vmem [shape: f32[1,256], index: 2, kind: input, shape index: {}]
  %s3 = inlined_call_operand.hbm [shape: f32[256,256], index: 3, kind: input, shape index: {}]
  %s4 = inlined_call_operand.vmem [shape: f32[1,256], index: 4, kind: input, shape index: {}]
  %s5 = inlined_call_operand.vmem [shape: f32[256,1], index: 5, kind: input, shape index: {}]
  %s6 = inlined_call_operand.<no memory space> [shape: f32[1,1], index: 6, kind: input, shape index: {}]
  %s7 = inlined_call_operand.vmem [shape: f32[8,1], index: 7, kind: output, shape index: {}]
  %s8 = sld [smem:[#allocation0]]
  $region42: #{grasp_valid_forward.1} parent=0
    _
  %s10 = ssub.s32 1, %s8
  %s11 = scalar_select 0, %s10, %s8
  %12 = sst [smem:[#allocation2]] %s6
  $region1: #{grasp_valid_forward.1} parent=0
    #allocation3 [shape = 'u8[262144]{0}', space=vmem, size = 0x40000, scoped, tag = 'input window, operand 3, single buffered']
    #allocation4 [shape = 's32[1]{0}', space=sflag, size = 0x4, scoped, tag = 'scoped memory for grasp_valid_forward.1']
    %13 = vsyncpa [#allocation4], 0
    // Predicated region
    $region2: #{grasp_valid_forward.1} parent=1 // pred_check
      _
    $region3: #{grasp_valid_forward.1} parent=1 // pred_check_branch
      %15 = sbr.rel (0) target = $region5
    $region4: #{grasp_valid_forward.1} parent=1 // pred_region
      _
    $region5: #{grasp_valid_forward.1} parent=1 // pred_fallthru
      _
    // Predicated region
    $region6: #{grasp_valid_forward.1} parent=1 // pred_check
      _
    $region7: #{grasp_valid_forward.1} parent=1 // pred_check_branch
      %17 = sbr.rel (0) target = $region9
    $region8: #{grasp_valid_forward.1} parent=1 // pred_region
      _
    $region9: #{grasp_valid_forward.1} parent=1 // pred_fallthru
      _
    // Predicated region
    $region10: #{grasp_valid_forward.1} parent=1 // pred_check
      _
    $region11: #{grasp_valid_forward.1} parent=1 // pred_check_branch
      %19 = sbr.rel (0) target = $region13
    $region12: #{grasp_valid_forward.1} parent=1 // pred_region
      _
    $region13: #{grasp_valid_forward.1} parent=1 // pred_fallthru
      _
    // Predicated region
    $region14: #{grasp_valid_forward.1} parent=1 // pred_check
      _
    $region15: #{grasp_valid_forward.1} parent=1 // pred_check_branch
      %21 = sbr.rel (0) target = $region17
    $region16: #{grasp_valid_forward.1} parent=1 // pred_region
      %s23 = ssub.s32 8192, 8192
      %24 = vsyncadd [#allocation4], %s23
      %s25 = sshll.u32 [#allocation3], 4
      %s26 = int_to_ptr.vmem [resolvable:$true] %s25
      %31 = dma.hbm_to_vmem [thread:$0]  %s3, 8192, %s26, [#allocation4], 256, 256, 16
    $region17: #{grasp_valid_forward.1} parent=1 // pred_fallthru
      _
    // Predicated region
    $region18: #{grasp_valid_forward.1} parent=1 // pred_check
      _
    $region19: #{grasp_valid_forward.1} parent=1 // pred_check_branch
      %33 = sbr.rel (0) target = $region21
    $region20: #{grasp_valid_forward.1} parent=1 // pred_region
      _
    $region21: #{grasp_valid_forward.1} parent=1 // pred_fallthru
      _
    // Predicated region
    $region22: #{grasp_valid_forward.1} parent=1 // pred_check
      _
    $region23: #{grasp_valid_forward.1} parent=1 // pred_check_branch
      %35 = sbr.rel (0) target = $region25
    $region24: #{grasp_valid_forward.1} parent=1 // pred_region
      _
    $region25: #{grasp_valid_forward.1} parent=1 // pred_fallthru
      _
    // Predicated region
    $region26: #{grasp_valid_forward.1} parent=1 // pred_check
      _
    $region27: #{grasp_valid_forward.1} parent=1 // pred_check_branch
      %37 = sbr.rel (0) target = $region29
    $region28: #{grasp_valid_forward.1} parent=1 // pred_region
      _
    $region29: #{grasp_valid_forward.1} parent=1 // pred_fallthru
      _
    // Predicated region
    $region30: #{grasp_valid_forward.1} parent=1 // pred_check
      _
    $region31: #{grasp_valid_forward.1} parent=1 // pred_check_branch
      %39 = sbr.rel (0) target = $region33
    $region32: #{grasp_valid_forward.1} parent=1 // pred_region
      %40 = dma.done [#allocation4], 8192
    $region33: #{grasp_valid_forward.1} parent=1 // pred_fallthru
      _
    %v41 = vld [vmem:[%s0] sm:$0xff]
    %v42 = vld [vmem:[%s1] sm:$0xff]
    %v43 = vld [vmem:[%s1 + $0x8] sm:$0xff]
    %v44 = vld [vmem:[%s1 + $0x10] sm:$0xff]
    %v45 = vld [vmem:[%s1 + $0x18] sm:$0xff]
    %v46 = vld [vmem:[%s1 + $0x20] sm:$0xff]
    %v47 = vld [vmem:[%s1 + $0x28] sm:$0xff]
    %v48 = vld [vmem:[%s1 + $0x30] sm:$0xff]
    %v49 = vld [vmem:[%s1 + $0x38] sm:$0xff]
    %v50 = vld [vmem:[%s1 + $0x40] sm:$0xff]
    %v51 = vld [vmem:[%s1 + $0x48] sm:$0xff]
    %v52 = vld [vmem:[%s1 + $0x50] sm:$0xff]
    %v53 = vld [vmem:[%s1 + $0x58] sm:$0xff]
    %v54 = vld [vmem:[%s1 + $0x60] sm:$0xff]
    %v55 = vld [vmem:[%s1 + $0x68] sm:$0xff]
    %v56 = vld [vmem:[%s1 + $0x70] sm:$0xff]
    %v57 = vld [vmem:[%s1 + $0x78] sm:$0xff]
    %v58 = vld [vmem:[%s1 + $0x80] sm:$0xff]
    %v59 = vld [vmem:[%s1 + $0x88] sm:$0xff]
    %v60 = vld [vmem:[%s2] sm:$0x3]
    %v62 = vlaneseq
    %v63 = vshrl.u32 %v62, 7
    %v64 = vsub.s32 0, %v63
    %v65 = vrot.slane %v60, %v64
    %v66 = vlaneseq
    %v67 = vshrl.u32 %v66, 7
    %v68 = vsub.s32 1, %v67
    %v69 = vrot.slane %v60, %v68
    %vm72 = vcmask 588800
    %v74 = vsel %vm72, %v41, 0
    %76 = vmatprep.subr.mxu0 %v43
    %77 = vmatpush1.msra.mxu0 %v42
    %78 = vmatprep.subr.mxu0 %v45
    %79 = vmatpush1.msra.mxu0 %v44
    %80 = vmatprep.subr.mxu0 %v47
    %81 = vmatpush1.msra.mxu0 %v46
    %82 = vmatprep.subr.mxu0 %v49
    %83 = vmatpush1.msra.mxu0 %v48
    %84 = vmatprep.subr.mxu0 %v51
    %85 = vmatpush1.msra.mxu0 %v50
    %86 = vmatprep.subr.mxu0 %v53
    %87 = vmatpush1.msra.mxu0 %v52
    %88 = vmatprep.subr.mxu0 %v55
    %89 = vmatpush1.msra.mxu0 %v54
    %90 = vmatprep.subr.mxu0 %v57
    %91 = vmatpush1.msra.mxu0 %v56
    %92 = vmatprep.subr.mxu0 %v59
    %93 = vmatpush1.msra.mxu0 %v58
    %94 = vmatprep.subr.mxu0 0.0
    %95 = vmatpush1.msra.mxu0 0.0
    %96 = vmatprep.subr.mxu0 0.0
    %97 = vmatpush1.msra.mxu0 0.0
    %98 = vmatprep.subr.mxu0 0.0
    %99 = vmatpush1.msra.mxu0 0.0
    %100 = vmatprep.subr.mxu0 0.0
    %101 = vmatpush1.msra.mxu0 0.0
    %102 = vmatprep.subr.mxu0 0.0
    %103 = vmatpush1.msra.mxu0 0.0
    %104 = vmatprep.subr.mxu0 0.0
    %105 = vmatpush1.msra.mxu0 0.0
    %106 = vmatprep.subr.mxu0 0.0
    %107 = vmatpush1.msra.mxu0 0.0
    %108 = vmatprep.subr.mxu0 0.0
    %109 = vmatpush1.msra.mxu0 0.0
    %110 = vmatprep.subr.mxu0 0.0
    %111 = vmatpush1.msra.mxu0 0.0
    %112 = vmatprep.subr.mxu0 0.0
    %113 = vmatpush1.msra.mxu0 0.0
    %114 = vmatprep.subr.mxu0 0.0
    %115 = vmatpush1.msra.mxu0 0.0
    %116 = vmatprep.subr.mxu0 0.0
    %117 = vmatpush1.msra.mxu0 0.0
    %118 = vmatprep.subr.mxu0 0.0
    %119 = vmatpush1.msra.mxu0 0.0
    %120 = vmatprep.subr.mxu0 0.0
    %121 = vmatpush1.msra.mxu0 0.0
    %122 = vmatprep.subr.mxu0 0.0
    %123 = vmatpush1.msra.mxu0 0.0
    %124 = vmatprep.subr.mxu0 0.0
    %125 = vmatpush1.msra.mxu0 0.0
    %126 = vmatprep.subr.mxu0 0.0
    %127 = vmatpush1.msra.mxu0 0.0
    %128 = vmatprep.subr.mxu0 0.0
    %129 = vmatpush1.msra.mxu0 0.0
    %130 = vmatprep.subr.mxu0 0.0
    %131 = vmatpush1.msra.mxu0 0.0
    %132 = vmatprep.subr.mxu0 0.0
    %133 = vmatpush1.msra.mxu0 0.0
    %134 = vmatprep.subr.mxu0 0.0
    %135 = vmatpush1.msra.mxu0 0.0
    %136 = vmatprep.subr.mxu0 0.0
    %137 = vmatpush1.msra.mxu0 0.0
    %138 = vmatprep.subr.mxu0 0.0
    %139 = vmatpush1.msra.mxu0 0.0
    %140 = vmatprep.mubr.f32.mxu0 0.0
    %141 = vmatmul.mubr.f32.gmra.mrb[0].mxu0 %v74
    %v142 = vpop.f32.mrb[0].mxu0
    %v143 = vadd.f32 %v65, %v142
    %v144 = vpop.f32.mrb[0].mxu0
    %v145 = vadd.f32 %v69, %v144
    %146 = vdwg.mxu0
    %v147 = vmax.f32 %v143, 0.0
    %v148 = vmax.f32 %v145, 0.0
    %v149 = vld [vmem:[#allocation3] sm:$0xff]
    %v150 = vld [vmem:[#allocation3 + $0x8] sm:$0xff]
    %v151 = vld [vmem:[#allocation3 + $0x10] sm:$0xff]
    %v152 = vld [vmem:[#allocation3 + $0x18] sm:$0xff]
    %v153 = vld [vmem:[#allocation3 + $0x20] sm:$0xff]
    %v154 = vld [vmem:[#allocation3 + $0x28] sm:$0xff]
    %v155 = vld [vmem:[#allocation3 + $0x30] sm:$0xff]
    %v156 = vld [vmem:[#allocation3 + $0x38] sm:$0xff]
    %v157 = vld [vmem:[#allocation3 + $0x40] sm:$0xff]
    %v158 = vld [vmem:[#allocation3 + $0x48] sm:$0xff]
    %v159 = vld [vmem:[#allocation3 + $0x50] sm:$0xff]
    %v160 = vld [vmem:[#allocation3 + $0x58] sm:$0xff]
    %v161 = vld [vmem:[#allocation3 + $0x60] sm:$0xff]
    %v162 = vld [vmem:[#allocation3 + $0x68] sm:$0xff]
    %v163 = vld [vmem:[#allocation3 + $0x70] sm:$0xff]
    %v164 = vld [vmem:[#allocation3 + $0x78] sm:$0xff]
    %v165 = vld [vmem:[#allocation3 + $0x80] sm:$0xff]
    %v166 = vld [vmem:[#allocation3 + $0x88] sm:$0xff]
    %v167 = vld [vmem:[#allocation3 + $0x90] sm:$0xff]
    %v168 = vld [vmem:[#allocation3 + $0x98] sm:$0xff]
    %v169 = vld [vmem:[#allocation3 + $0xa0] sm:$0xff]
    %v170 = vld [vmem:[#allocation3 + $0xa8] sm:$0xff]
    %v171 = vld [vmem:[#allocation3 + $0xb0] sm:$0xff]
    %v172 = vld [vmem:[#allocation3 + $0xb8] sm:$0xff]
    %v173 = vld [vmem:[#allocation3 + $0xc0] sm:$0xff]
    %v174 = vld [vmem:[#allocation3 + $0xc8] sm:$0xff]
    %v175 = vld [vmem:[#allocation3 + $0xd0] sm:$0xff]
    %v176 = vld [vmem:[#allocation3 + $0xd8] sm:$0xff]
    %v177 = vld [vmem:[#allocation3 + $0xe0] sm:$0xff]
    %v178 = vld [vmem:[#allocation3 + $0xe8] sm:$0xff]
    %v179 = vld [vmem:[#allocation3 + $0xf0] sm:$0xff]
    %v180 = vld [vmem:[#allocation3 + $0xf8] sm:$0xff]
    %v181 = vld [vmem:[#allocation3 + $0x100] sm:$0xff]
    %v182 = vld [vmem:[#allocation3 + $0x108] sm:$0xff]
    %v183 = vld [vmem:[#allocation3 + $0x110] sm:$0xff]
    %v184 = vld [vmem:[#allocation3 + $0x118] sm:$0xff]
    %v185 = vld [vmem:[#allocation3 + $0x120] sm:$0xff]
    %v186 = vld [vmem:[#allocation3 + $0x128] sm:$0xff]
    %v187 = vld [vmem:[#allocation3 + $0x130] sm:$0xff]
    %v188 = vld [vmem:[#allocation3 + $0x138] sm:$0xff]
    %v189 = vld [vmem:[#allocation3 + $0x140] sm:$0xff]
    %v190 = vld [vmem:[#allocation3 + $0x148] sm:$0xff]
    %v191 = vld [vmem:[#allocation3 + $0x150] sm:$0xff]
    %v192 = vld [vmem:[#allocation3 + $0x158] sm:$0xff]
    %v193 = vld [vmem:[#allocation3 + $0x160] sm:$0xff]
    %v194 = vld [vmem:[#allocation3 + $0x168] sm:$0xff]
    %v195 = vld [vmem:[#allocation3 + $0x170] sm:$0xff]
    %v196 = vld [vmem:[#allocation3 + $0x178] sm:$0xff]
    %v197 = vld [vmem:[#allocation3 + $0x180] sm:$0xff]
    %v198 = vld [vmem:[#allocation3 + $0x188] sm:$0xff]
    %v199 = vld [vmem:[#allocation3 + $0x190] sm:$0xff]
    %v200 = vld [vmem:[#allocation3 + $0x198] sm:$0xff]
    %v201 = vld [vmem:[#allocation3 + $0x1a0] sm:$0xff]
    %v202 = vld [vmem:[#allocation3 + $0x1a8] sm:$0xff]
    %v203 = vld [vmem:[#allocation3 + $0x1b0] sm:$0xff]
    %v204 = vld [vmem:[#allocation3 + $0x1b8] sm:$0xff]
    %v205 = vld [vmem:[#allocation3 + $0x1c0] sm:$0xff]
    %v206 = vld [vmem:[#allocation3 + $0x1c8] sm:$0xff]
    %v207 = vld [vmem:[#allocation3 + $0x1d0] sm:$0xff]
    %v208 = vld [vmem:[#allocation3 + $0x1d8] sm:$0xff]
    %v209 = vld [vmem:[#allocation3 + $0x1e0] sm:$0xff]
    %v210 = vld [vmem:[#allocation3 + $0x1e8] sm:$0xff]
    %v211 = vld [vmem:[#allocation3 + $0x1f0] sm:$0xff]
    %v212 = vld [vmem:[#allocation3 + $0x1f8] sm:$0xff]
    %v213 = vld [vmem:[%s4] sm:$0x3]
    %v215 = vlaneseq
    %v216 = vshrl.u32 %v215, 7
    %v217 = vsub.s32 0, %v216
    %v218 = vrot.slane %v213, %v217
    %v219 = vlaneseq
    %v220 = vshrl.u32 %v219, 7
    %v221 = vsub.s32 1, %v220
    %v222 = vrot.slane %v213, %v221
    %225 = vmatprep.subr.mxu0 %v150
    %226 = vmatpush1.msra.mxu0 %v149
    %227 = vmatprep.subr.mxu0 %v152
    %228 = vmatpush1.msra.mxu0 %v151
    %229 = vmatprep.subr.mxu0 %v154
    %230 = vmatpush1.msra.mxu0 %v153
    %231 = vmatprep.subr.mxu0 %v156
    %232 = vmatpush1.msra.mxu0 %v155
    %233 = vmatprep.subr.mxu0 %v158
    %234 = vmatpush1.msra.mxu0 %v157
    %235 = vmatprep.subr.mxu0 %v160
    %236 = vmatpush1.msra.mxu0 %v159
    %237 = vmatprep.subr.mxu0 %v162
    %238 = vmatpush1.msra.mxu0 %v161
    %239 = vmatprep.subr.mxu0 %v164
    %240 = vmatpush1.msra.mxu0 %v163
    %241 = vmatprep.subr.mxu0 %v166
    %242 = vmatpush1.msra.mxu0 %v165
    %243 = vmatprep.subr.mxu0 %v168
    %244 = vmatpush1.msra.mxu0 %v167
    %245 = vmatprep.subr.mxu0 %v170
    %246 = vmatpush1.msra.mxu0 %v169
    %247 = vmatprep.subr.mxu0 %v172
    %248 = vmatpush1.msra.mxu0 %v171
    %249 = vmatprep.subr.mxu0 %v174
    %250 = vmatpush1.msra.mxu0 %v173
    %251 = vmatprep.subr.mxu0 %v176
    %252 = vmatpush1.msra.mxu0 %v175
    %253 = vmatprep.subr.mxu0 %v178
    %254 = vmatpush1.msra.mxu0 %v177
    %255 = vmatprep.subr.mxu0 %v180
    %256 = vmatpush1.msra.mxu0 %v179
    %257 = vmatprep.subr.mxu0 %v182
    %258 = vmatpush1.msra.mxu0 %v181
    %259 = vmatprep.subr.mxu0 %v184
    %260 = vmatpush1.msra.mxu0 %v183
    %261 = vmatprep.subr.mxu0 %v186
    %262 = vmatpush1.msra.mxu0 %v185
    %263 = vmatprep.subr.mxu0 %v188
    %264 = vmatpush1.msra.mxu0 %v187
    %265 = vmatprep.subr.mxu0 %v190
    %266 = vmatpush1.msra.mxu0 %v189
    %267 = vmatprep.subr.mxu0 %v192
    %268 = vmatpush1.msra.mxu0 %v191
    %269 = vmatprep.subr.mxu0 %v194
    %270 = vmatpush1.msra.mxu0 %v193
    %271 = vmatprep.subr.mxu0 %v196
    %272 = vmatpush1.msra.mxu0 %v195
    %273 = vmatprep.subr.mxu0 %v198
    %274 = vmatpush1.msra.mxu0 %v197
    %275 = vmatprep.subr.mxu0 %v200
    %276 = vmatpush1.msra.mxu0 %v199
    %277 = vmatprep.subr.mxu0 %v202
    %278 = vmatpush1.msra.mxu0 %v201
    %279 = vmatprep.subr.mxu0 %v204
    %280 = vmatpush1.msra.mxu0 %v203
    %281 = vmatprep.subr.mxu0 %v206
    %282 = vmatpush1.msra.mxu0 %v205
    %283 = vmatprep.subr.mxu0 %v208
    %284 = vmatpush1.msra.mxu0 %v207
    %285 = vmatprep.subr.mxu0 %v210
    %286 = vmatpush1.msra.mxu0 %v209
    %287 = vmatprep.subr.mxu0 %v212
    %288 = vmatpush1.msra.mxu0 %v211
    %289 = vmatprep.mubr.f32.mxu0 %v148
    %290 = vmatmul.mubr.f32.gmra.mrb[0].mxu0 %v147
    %v291 = vpop.f32.mrb[0].mxu0
    %v292 = vadd.f32 %v218, %v291
    %v293 = vpop.f32.mrb[0].mxu0
    %v294 = vadd.f32 %v222, %v293
    %295 = vdwg.mxu0
    %v296 = vmax.f32 %v292, 0.0
    %v297 = vmax.f32 %v294, 0.0
    %v298 = vld [vmem:[%s5] sm:$0xff]
    %v299 = vld [vmem:[%s5 + $0x8] sm:$0xff]
    %v300 = vld [vmem:[%s5 + $0x10] sm:$0xff]
    %v301 = vld [vmem:[%s5 + $0x18] sm:$0xff]
    %v302 = vld [vmem:[%s5 + $0x20] sm:$0xff]
    %v303 = vld [vmem:[%s5 + $0x28] sm:$0xff]
    %v304 = vld [vmem:[%s5 + $0x30] sm:$0xff]
    %v305 = vld [vmem:[%s5 + $0x38] sm:$0xff]
    %v306 = vld [vmem:[%s5 + $0x40] sm:$0xff]
    %v307 = vld [vmem:[%s5 + $0x48] sm:$0xff]
    %v308 = vld [vmem:[%s5 + $0x50] sm:$0xff]
    %v309 = vld [vmem:[%s5 + $0x58] sm:$0xff]
    %v310 = vld [vmem:[%s5 + $0x60] sm:$0xff]
    %v311 = vld [vmem:[%s5 + $0x68] sm:$0xff]
    %v312 = vld [vmem:[%s5 + $0x70] sm:$0xff]
    %v313 = vld [vmem:[%s5 + $0x78] sm:$0xff]
    %v314 = vld [vmem:[%s5 + $0x80] sm:$0xff]
    %v315 = vld [vmem:[%s5 + $0x88] sm:$0xff]
    %v316 = vld [vmem:[%s5 + $0x90] sm:$0xff]
    %v317 = vld [vmem:[%s5 + $0x98] sm:$0xff]
    %v318 = vld [vmem:[%s5 + $0xa0] sm:$0xff]
    %v319 = vld [vmem:[%s5 + $0xa8] sm:$0xff]
    %v320 = vld [vmem:[%s5 + $0xb0] sm:$0xff]
    %v321 = vld [vmem:[%s5 + $0xb8] sm:$0xff]
    %v322 = vld [vmem:[%s5 + $0xc0] sm:$0xff]
    %v323 = vld [vmem:[%s5 + $0xc8] sm:$0xff]
    %v324 = vld [vmem:[%s5 + $0xd0] sm:$0xff]
    %v325 = vld [vmem:[%s5 + $0xd8] sm:$0xff]
    %v326 = vld [vmem:[%s5 + $0xe0] sm:$0xff]
    %v327 = vld [vmem:[%s5 + $0xe8] sm:$0xff]
    %v328 = vld [vmem:[%s5 + $0xf0] sm:$0xff]
    %v329 = vld [vmem:[%s5 + $0xf8] sm:$0xff]
    %s330 = sld [smem:[#allocation2]]
    %v331 = vstv %s330
    %332 = vmatprep.subr.mxu0 0.0
    %333 = vmatpush1.msra.mxu0 %v298
    %334 = vmatprep.subr.mxu0 0.0
    %335 = vmatpush1.msra.mxu0 %v299
    %336 = vmatprep.subr.mxu0 0.0
    %337 = vmatpush1.msra.mxu0 %v300
    %338 = vmatprep.subr.mxu0 0.0
    %339 = vmatpush1.msra.mxu0 %v301
    %340 = vmatprep.subr.mxu0 0.0
    %341 = vmatpush1.msra.mxu0 %v302
    %342 = vmatprep.subr.mxu0 0.0
    %343 = vmatpush1.msra.mxu0 %v303
    %344 = vmatprep.subr.mxu0 0.0
    %345 = vmatpush1.msra.mxu0 %v304
    %346 = vmatprep.subr.mxu0 0.0
    %347 = vmatpush1.msra.mxu0 %v305
    %348 = vmatprep.subr.mxu0 0.0
    %349 = vmatpush1.msra.mxu0 %v306
    %350 = vmatprep.subr.mxu0 0.0
    %351 = vmatpush1.msra.mxu0 %v307
    %352 = vmatprep.subr.mxu0 0.0
    %353 = vmatpush1.msra.mxu0 %v308
    %354 = vmatprep.subr.mxu0 0.0
    %355 = vmatpush1.msra.mxu0 %v309
    %356 = vmatprep.subr.mxu0 0.0
    %357 = vmatpush1.msra.mxu0 %v310
    %358 = vmatprep.subr.mxu0 0.0
    %359 = vmatpush1.msra.mxu0 %v311
    %360 = vmatprep.subr.mxu0 0.0
    %361 = vmatpush1.msra.mxu0 %v312
    %362 = vmatprep.subr.mxu0 0.0
    %363 = vmatpush1.msra.mxu0 %v313
    %364 = vmatprep.subr.mxu0 0.0
    %365 = vmatpush1.msra.mxu0 %v314
    %366 = vmatprep.subr.mxu0 0.0
    %367 = vmatpush1.msra.mxu0 %v315
    %368 = vmatprep.subr.mxu0 0.0
    %369 = vmatpush1.msra.mxu0 %v316
    %370 = vmatprep.subr.mxu0 0.0
    %371 = vmatpush1.msra.mxu0 %v317
    %372 = vmatprep.subr.mxu0 0.0
    %373 = vmatpush1.msra.mxu0 %v318
    %374 = vmatprep.subr.mxu0 0.0
    %375 = vmatpush1.msra.mxu0 %v319
    %376 = vmatprep.subr.mxu0 0.0
    %377 = vmatpush1.msra.mxu0 %v320
    %378 = vmatprep.subr.mxu0 0.0
    %379 = vmatpush1.msra.mxu0 %v321
    %380 = vmatprep.subr.mxu0 0.0
    %381 = vmatpush1.msra.mxu0 %v322
    %382 = vmatprep.subr.mxu0 0.0
    %383 = vmatpush1.msra.mxu0 %v323
    %384 = vmatprep.subr.mxu0 0.0
    %385 = vmatpush1.msra.mxu0 %v324
    %386 = vmatprep.subr.mxu0 0.0
    %387 = vmatpush1.msra.mxu0 %v325
    %388 = vmatprep.subr.mxu0 0.0
    %389 = vmatpush1.msra.mxu0 %v326
    %390 = vmatprep.subr.mxu0 0.0
    %391 = vmatpush1.msra.mxu0 %v327
    %392 = vmatprep.subr.mxu0 0.0
    %393 = vmatpush1.msra.mxu0 %v328
    %394 = vmatprep.subr.mxu0 0.0
    %395 = vmatpush1.msra.mxu0 %v329
    %396 = vmatprep.mubr.f32.mxu0 %v297
    %397 = vmatmul.mubr.f32.gmra.mrb[0].mxu0 %v296
    %v398 = vpop.f32.mrb[0].mxu0
    %v399 = vadd.f32 %v331, %v398
    %v400 = vpop.f32.mrb[0].mxu0
    %401 = vdwg.mxu0
    %v402 = vsub.f32 0.0, %v399
    %v403 = vmul.f32 %v402, 1.442695
    %v404 = vpow.pop %v403
    %v405 = vadd.f32 %v404, 1.0
    %v406 = vrcp.pop %v405
    %v407 = vmul.f32 1.0, %v406
    %vm408 = vcmask 7168
    %409 = vst.msk [vmem:[%s7] sm:$0xff] %vm408, %v407
    // Predicated region
    $region34: #{grasp_valid_forward.1} parent=1 // pred_check
      _
    $region35: #{grasp_valid_forward.1} parent=1 // pred_check_branch
      %411 = sbr.rel (0) target = $region37
    $region36: #{grasp_valid_forward.1} parent=1 // pred_region
      _
    $region37: #{grasp_valid_forward.1} parent=1 // pred_fallthru
      _
    // Predicated region
    $region38: #{grasp_valid_forward.1} parent=1 // pred_check
      _
    $region39: #{grasp_valid_forward.1} parent=1 // pred_check_branch
      %413 = sbr.rel (0) target = $region41
    $region40: #{grasp_valid_forward.1} parent=1 // pred_region
      _
    $region41: #{grasp_valid_forward.1} parent=1 // pred_fallthru
      _
    %414 = vsyncpa [#allocation4], 1

</llo_original>
